<compile_context>
chip_gen: v7x
topology: tpu7x:2x2x1
jax: 0.10.0
libtpu: 0.0.40
codegen_flags: <defaults>
</compile_context>

<pallas_src>
import jax
import jax.numpy as jnp
from jax.experimental import pallas as pl
from jax.experimental.pallas import tpu as pltpu


_LANE = 128
_MAX_BLOCK_BYTES = 2 * 1024 * 1024      # per-block cap; ~4x this (dbl-buffered in+out)
                                        # fits scoped VMEM on v5e/v6e/v7x with headroom


def _gate_select_kernel(topk_ref, gate_ref, x_ref, o_ref):
    """grid = (k, n_hw_tiles).

    x_ref : (B, 1, rt, lane) tile of band topk[j] (gathered via index_map).
    gate_ref[j] : precomputed hard-sigmoid gate for that band (f32 scalar, SMEM).
    Body is a single VPU multiply fused into the copy."""
    del topk_ref  # consumed only by the index_map (band gather index)
    j = pl.program_id(0)
    g = gate_ref[j].astype(x_ref.dtype)          # keep the mul in x's dtype
    o_ref[...] = (x_ref[...] * g).astype(o_ref.dtype)


def get_topk_stable(z, k):
    """Matches FeatureSelector.get_topk_stable: kth-largest value, then the k
    largest indices whose value >= kth value, sorted ascending."""
    kth = jax.lax.top_k(z, k)[0][-1]
    idx = jnp.arange(z.shape[0], dtype=jnp.int32)
    qualified = jnp.where(z >= kth, idx, -1)
    last_k = jax.lax.top_k(qualified, k)[0]      # k largest qualifying indices
    return jnp.sort(last_k).astype(jnp.int32)


def feature_selector_forward(x, mu, noise, extra_noise, sigma, target_number,
                             training=True, use_pallas=None):
    # TODO(synk): headstart_idx / const-mask branches and the 2-D input branch are
    # trivial indexing / elementwise paths and are not reproduced here.
    B, one, C, H, W = x.shape
    assert one == 1
    k = int(target_number)
    assert 0 < k <= C, "target_number must be in (0, input_dim]"
    HW = H * W
    itemsize = jnp.dtype(x.dtype).itemsize

    # z = mu + sigma * (noise + 0.25 * extra_noise) * training   (glue, size C)
    z = (mu + sigma * (noise + 0.25 * extra_noise) *
         (1.0 if training else 0.0)).astype(jnp.float32)
    topk = get_topk_stable(z, k)
    # hard_sigmoid(z[topk]) = clip(z+0.5, 0, 1); one f32 scalar per selected band.
    gate_topk = jnp.clip(z[topk] + 0.5, 0.0, 1.0).astype(jnp.float32)

    if use_pallas is None:
        # Tiny problems are ~100% pipeline overhead in Pallas; let XLA fuse them.
        use_pallas = (B * k * HW * itemsize) >= (1 << 20)

    x_sq = x.reshape(B, C, H, W)
    if not use_pallas:
        out = jnp.take(x_sq, topk, axis=1) * gate_topk.astype(x.dtype)[None, :, None, None]
        return out[:, None], topk, z

    # --- Pallas path: sublane/lane-dense tail layout -------------------------
    if HW % _LANE == 0:
        R = HW // _LANE
        x_r = x.reshape(B, C, R, _LANE)          # contiguous reshape, no data movement
        lane = _LANE
    else:
        # TODO(synk): pad HW to a multiple of 128 for full sublane density here.
        R = 1
        lane = HW
        x_r = x.reshape(B, C, 1, HW)

    # Rows-per-tile, budgeted so double-buffered in+out stays inside scoped VMEM.
    rows_budget = max(1, _MAX_BLOCK_BYTES // (B * lane * itemsize))
    if R <= rows_budget:
        rt, n_rt = R, 1                          # block last-2 dims == full array dims
    else:
        rt = max(8, (rows_budget // 8) * 8)      # multiple of 8 -> (8,128) rule met
        n_rt = pl.cdiv(R, rt)

    out = pl.pallas_call(
        _gate_select_kernel,
        out_shape=jax.ShapeDtypeStruct((B, k, R, lane), x.dtype),
        grid_spec=pltpu.PrefetchScalarGridSpec(
            num_scalar_prefetch=2,               # topk (int32), gate_topk (f32) -> SMEM
            grid=(k, n_rt),
            in_specs=[
                pl.BlockSpec((B, 1, rt, lane),
                             lambda j, t, topk_ref, gate_ref: (0, topk_ref[j], t, 0)),
            ],
            out_specs=pl.BlockSpec((B, 1, rt, lane),
                                   lambda j, t, topk_ref, gate_ref: (0, j, t, 0)),
        ),
        compiler_params=pltpu.CompilerParams(
            dimension_semantics=("parallel", "parallel"),   # every block written once
            vmem_limit_bytes=32 * 1024 * 1024),
        cost_estimate=pl.CostEstimate(
            flops=B * k * HW,
            transcendentals=0,
            bytes_accessed=2 * B * k * HW * itemsize),
    )(topk, gate_topk, x_r)

    out = out.reshape(B, k, H, W)
    return out[:, None], topk, z                 # [B, 1, k, H, W]


if __name__ == "__main__":
    key = jax.random.PRNGKey(0)
    B, C, H, W = 2, 8, 16, 16                    # input_dim = C = 8 bands
    target_number = 4
    sigma = 0.5

    k1, k2, k3 = jax.random.split(key, 3)
    # deterministic "module init": mu = 0.001*randn(input_dim), noise = randn(input_dim)
    mu = 0.001 * jax.random.normal(k1, (C,), jnp.float32)
    noise = jax.random.normal(k2, (C,), jnp.float32)
    extra_noise = jnp.zeros((C,), jnp.float32)
    x = jax.random.normal(k3, (B, 1, C, H, W), jnp.float32)

    # Force the Pallas path (the demo shape would otherwise take the XLA fast path).
    out, topk, z = feature_selector_forward(x, mu, noise, extra_noise, sigma,
                                            target_number, training=True,
                                            use_pallas=True)
    out = jax.block_until_ready(out)

    # Pure-JAX reference of the same forward semantics.
    gate = jnp.clip(z + 0.5, 0.0, 1.0)
    x_sq = x.reshape(B, C, H, W)
    ref = (x_sq[:, topk] * gate[topk][None, :, None, None])[:, None]

    assert out.shape == (B, 1, target_number, H, W)
    assert jnp.allclose(out, ref, atol=1e-6), "kernel output mismatch vs reference"
    print("KERNEL_OK")
</pallas_src>

<mosaic_0001>
module attributes {stable_mosaic.version = 11 : i64} {
  func.func @_gate_select_kernel(%arg0: i32, %arg1: i32, %arg2: memref<4xi32, #tpu.memory_space<smem>>, %arg3: memref<4xf32, #tpu.memory_space<smem>>, %arg4: memref<2x1x2x128xf32, #tpu.memory_space<vmem>>, %arg5: memref<2x1x2x128xf32, #tpu.memory_space<vmem>>) attributes {dimension_semantics = [#tpu.dimension_semantics<parallel>, #tpu.dimension_semantics<parallel>], iteration_bounds = array<i64: 4, 1>, scalar_prefetch = 2 : i64, scratch_operands = 0 : i64, tpu.core_type = #tpu.core_type<tc>, window_params = [{transform_indices = @transform_0, window_bounds = array<i64: 2, 1, 2, 128>}, {transform_indices = @transform_1, window_bounds = array<i64: 2, 1, 2, 128>}]} {
    %0 = arith.index_cast %arg0 : i32 to index
    %1 = memref.load %arg3[%0] : memref<4xf32, #tpu.memory_space<smem>>
    %c0 = arith.constant 0 : index
    %c0_0 = arith.constant 0 : index
    %c0_1 = arith.constant 0 : index
    %c0_2 = arith.constant 0 : index
    %2 = vector.load %arg4[%c0, %c0_0, %c0_1, %c0_2] : memref<2x1x2x128xf32, #tpu.memory_space<vmem>>, vector<2x1x2x128xf32>
    %3 = vector.broadcast %1 : f32 to vector<2x1x2x128xf32>
    %4 = arith.mulf %2, %3 : vector<2x1x2x128xf32>
    %c0_3 = arith.constant 0 : index
    %c0_4 = arith.constant 0 : index
    %c0_5 = arith.constant 0 : index
    %c0_6 = arith.constant 0 : index
    %5 = vector.load %arg5[%c0_3, %c0_4, %c0_5, %c0_6] : memref<2x1x2x128xf32, #tpu.memory_space<vmem>>, vector<2x1x2x128xf32>
    tpu.vector_store %arg5[%c0_3, %c0_4, %c0_5, %c0_6], %4 {strides = array<i32>} : memref<2x1x2x128xf32, #tpu.memory_space<vmem>>, vector<2x1x2x128xf32>,
    return
  }
  func.func @transform_0(%arg0: i32, %arg1: i32, %arg2: memref<4xi32, #tpu.memory_space<smem>>, %arg3: memref<4xf32, #tpu.memory_space<smem>>) -> (i32, i32, i32, i32) {
    %0 = arith.index_cast %arg0 : i32 to index
    %1 = memref.load %arg2[%0] : memref<4xi32, #tpu.memory_space<smem>>
    %c0_i32 = arith.constant 0 : i32
    %c0_i32_0 = arith.constant 0 : i32
    %c0_i32_1 = arith.constant 0 : i32
    return %c0_i32, %1, %arg1, %c0_i32_0 : i32, i32, i32, i32
  }
  func.func @transform_1(%arg0: i32, %arg1: i32, %arg2: memref<4xi32, #tpu.memory_space<smem>>, %arg3: memref<4xf32, #tpu.memory_space<smem>>) -> (i32, i32, i32, i32) {
    %c0_i32 = arith.constant 0 : i32
    %c0_i32_0 = arith.constant 0 : i32
    %c0_i32_1 = arith.constant 0 : i32
    return %c0_i32, %arg0, %arg1, %c0_i32_0 : i32, i32, i32, i32
  }
}

</mosaic_0001>

<llo_original>
// kernel: tpu_custom_call.1
$region0: #{tpu_custom_call.1}
  #allocation0 [shape = 'u32[]', space=smem, size = 0x4, offset = 0x4, fixed_abs, tag = 'smem constant byte address 0x4 - core index']
  #allocation1 [shape = 'u32[144,128]{1,0:T(1,128)}', space=vmem, size = 0x12000, scoped, tag = 'internal scratch']
  #allocation2 [shape = 's32[1]{0}', space=sflag, size = 0x4, scoped, tag = 'scoped memory for tpu_custom_call.1']
  #allocation3 [shape = 'u8[512]{0}', space=smem, size = 0x200, scoped, tag = 'prefetched SMEM operand 0']
  #allocation4 [shape = 'u8[512]{0}', space=smem, size = 0x200, scoped, tag = 'prefetched SMEM operand 1']
  %s0 = inlined_call_operand.hbm [shape: s32[4], index: 0, kind: input, shape index: {}]
  %s1 = inlined_call_operand.vmem [shape: f32[4], index: 1, kind: input, shape index: {}]
  %s2 = inlined_call_operand.hbm [shape: f32[2,8,2,128], index: 2, kind: input, shape index: {}]
  %s3 = inlined_call_operand.hbm [shape: f32[2,4,2,128], index: 3, kind: output, shape index: {}]
  %s4 = sld [smem:[#allocation0]]
  $region41: #{tpu_custom_call.1} parent=0
    _
  %s6 = ssub.s32 1, %s4
  %s7 = scalar_select 0, %s6, %s4
  %9 = dma.hbm_to_smem %s0, 16, [#allocation3], [#allocation2]
  %s10 = sshll.u32 %s1, 4
  %s11 = int_to_ptr.vmem [resolvable:$true] %s10
  %13 = dma.vmem_to_smem %s11, 16, [#allocation4], [#allocation2]
  %14 = dma.done [#allocation2], 32
  %15 = sfence
  $region1: #{tpu_custom_call.1} parent=0
    #allocation5 [shape = 'u8[4096]{0}', space=vmem, size = 0x1000, scoped, tag = 'input window, operand 2']
    #allocation6 [shape = 's32[2]{0}', space=sflag, size = 0x8, scoped, tag = 'scoped memory for tpu_custom_call.1']
    #allocation7 [shape = 's32[2]{0}', space=sflag, size = 0x8, scoped, tag = 'scoped memory for tpu_custom_call.1']
    #allocation8 [shape = 'u8[4096]{0}', space=vmem, size = 0x1000, scoped, tag = 'output window, operand 0']
    %16 = vsyncpa [#allocation6], 0
    %s17 = scalar_lea.sflag [#allocation6], 1
    %18 = vsyncpa %s17, 0
    %19 = vsyncpa [#allocation7], 0
    %s20 = scalar_lea.sflag [#allocation7], 1
    %21 = vsyncpa %s20, 0
    loop: start=0, step=1, limit=6
    $region2: #{tpu_custom_call.1} parent=1 // loop_pre_header
      _
    $region3: #{tpu_custom_call.1} parent=1 // loop_header
      %s23 = sphi 0, %s27
      %p24 = scmp.ge.s32.totalorder %s23, 6
      %s30 = sphi 0, %s42
      %s31 = sphi 0, %s38
      %s32 = sphi 0, %s30
      %s33 = sphi 0, %s31
      %s34 = sphi 0, %s32
      %s35 = sphi 0, %s33
      %s49 = sphi 0, %s51
      %s52 = sphi 0, %s49
      %s53 = sphi 0, %s52
      %s69 = sphi 0, %s53
      %s77 = sphi 0, %s79
      %s80 = sphi 0, %s77
      %s81 = sphi 0, %s80
      %s97 = sphi 0, %s81
    $region4: #{tpu_custom_call.1} parent=1 // loop_header_branch
      %26 = sbr.rel (%p24) target = $region8
    $region5: #{tpu_custom_call.1} parent=1 // loop_body
      %s28 = ssub.s32 %s23, 1
      %s29 = ssub.s32 %s23, 2
      %s36 = sadd.s32 1, %s31
      %p37 = scmp.ge.s32.totalorder %s36, 1
      %s38 = scalar_select %p37, 0, %s36
      %s39 = sadd.s32 1, %s30
      %s40 = scalar_select %p37, %s39, %s30
      %p41 = scmp.ge.s32.totalorder %s40, 4
      %s42 = scalar_select %p41, 0, %s40
      %s43 = sld [smem:[#allocation3 + %s30]]
      %s44 = sld [smem:[#allocation3 + %s42]]
      %s45 = ssub.s32 %s43, %s44
      %s46 = ssub.s32 %s31, %s38
      %s47 = sor.u32 %s45, %s46
      %p48 = scmp.eq.s32.totalorder %s47, 0
      %s50 = sadd.s32 %s49, 1
      %s51 = scalar_select %p48, %s49, %s50
      %p54 = pneg %p48
      %p55 = scmp.eq.s32.totalorder %s23, 3
      %p56 = por %p54, %p55
      %p57 = scmp.ne.s32.totalorder %s49, %s52
      %p58 = scmp.eq.s32.totalorder %s23, 0
      %p59 = por %p57, %p58
      %p60 = scmp.ne.s32.totalorder %s49, %s52
      %p61 = scmp.eq.s32.totalorder %s28, 3
      %p62 = por %p60, %p61
      %p63 = scmp.ne.s32.totalorder %s52, %s53
      %p64 = scmp.eq.s32.totalorder %s28, 0
      %p65 = por %p63, %p64
      %p66 = scmp.ne.s32.totalorder %s52, %s53
      %p67 = scmp.eq.s32.totalorder %s29, 3
      %p68 = por %p66, %p67
      %p70 = scmp.ne.s32.totalorder %s53, %s69
      %p71 = scmp.eq.s32.totalorder %s29, 0
      %p72 = por %p70, %p71
      %s73 = ssub.s32 %s30, %s42
      %s74 = ssub.s32 %s31, %s38
      %s75 = sor.u32 %s73, %s74
      %p76 = scmp.eq.s32.totalorder %s75, 0
      %s78 = sadd.s32 %s77, 1
      %s79 = scalar_select %p76, %s77, %s78
      %p82 = pneg %p76
      %p83 = scmp.eq.s32.totalorder %s23, 3
      %p84 = por %p82, %p83
      %p85 = scmp.ne.s32.totalorder %s77, %s80
      %p86 = scmp.eq.s32.totalorder %s23, 0
      %p87 = por %p85, %p86
      %p88 = scmp.ne.s32.totalorder %s77, %s80
      %p89 = scmp.eq.s32.totalorder %s28, 3
      %p90 = por %p88, %p89
      %p91 = scmp.ne.s32.totalorder %s80, %s81
      %p92 = scmp.eq.s32.totalorder %s28, 0
      %p93 = por %p91, %p92
      %p94 = scmp.ne.s32.totalorder %s80, %s81
      %p95 = scmp.eq.s32.totalorder %s29, 3
      %p96 = por %p94, %p95
      %p98 = scmp.ne.s32.totalorder %s81, %s97
      %p99 = scmp.eq.s32.totalorder %s29, 0
      %p100 = por %p98, %p99
      %p101 = scmp.le.s32.totalorder 1, %s23
      %p102 = scmp.lt.s32.totalorder %s23, 5
      %p103 = pnand %p101, %p102
      %p104 = pneg %p103
      // Predicated region
      $region9: #{tpu_custom_call.1} parent=5 // pred_check
        _
      $region10: #{tpu_custom_call.1} parent=5 // pred_check_branch
        %106 = sbr.rel (%p103) target = $region12
      $region11: #{tpu_custom_call.1} parent=5 // pred_region
        %s107 = ssub.s32 %s23, 1
      $region12: #{tpu_custom_call.1} parent=5 // pred_fallthru
        _
      %p108 = scmp.lt.s32.totalorder %s23, 4
      // Predicated region
      $region13: #{tpu_custom_call.1} parent=5 // pred_check
        %p109 = pneg %p108
      $region14: #{tpu_custom_call.1} parent=5 // pred_check_branch
        %111 = sbr.rel (%p109) target = $region16
      $region15: #{tpu_custom_call.1} parent=5 // pred_region
        // Predicated region
        $region17: #{tpu_custom_call.1} parent=15 // pred_check
          %p112 = pneg %p59
        $region18: #{tpu_custom_call.1} parent=15 // pred_check_branch
          %114 = sbr.rel (%p112) target = $region20
        $region19: #{tpu_custom_call.1} parent=15 // pred_region
          %s115 = sand.u32 %s49, 1
          %s116 = scalar_lea.sflag [#allocation6], %s115
          %s117 = sand.u32 %s49, 1
          %s118 = smul.addr %s117, 4
          %s119 = scalar_lea.vmem [#allocation5], %s118
          %s120 = sld [smem:[#allocation3 + %s30]]
          %s122 = ssub.s32 64, 64
          %123 = vsyncadd %s116, %s122
          %s124 = sadd.s32 %s31, %s120
          %s125 = smul.addr %s124, 32
          %s126 = scalar_lea.hbm %s2, %s125
          %s127 = sshll.u32 %s119, 4
          %s128 = int_to_ptr.vmem [resolvable:$true] %s127
          %133 = dma.hbm_to_vmem [thread:$0]  %s126, 64, %s128, %s116, 256, 32, 2
        $region20: #{tpu_custom_call.1} parent=15 // pred_fallthru
          _
      $region16: #{tpu_custom_call.1} parent=5 // pred_fallthru
        _
      %p134 = scmp.le.s32.totalorder 1, %s23
      %p135 = scmp.lt.s32.totalorder %s23, 5
      %p136 = pnand %p134, %p135
      %p137 = pneg %p136
      // Predicated region
      $region21: #{tpu_custom_call.1} parent=5 // pred_check
        _
      $region22: #{tpu_custom_call.1} parent=5 // pred_check_branch
        %139 = sbr.rel (%p136) target = $region24
      $region23: #{tpu_custom_call.1} parent=5 // pred_region
        %s140 = ssub.s32 %s23, 1
        %s141 = sand.u32 %s52, 1
        %s142 = scalar_lea.sflag [#allocation6], %s141
        %s143 = sand.u32 %s52, 1
        %s144 = smul.addr %s143, 4
        %s145 = scalar_lea.vmem [#allocation5], %s144
        // Predicated region
        $region25: #{tpu_custom_call.1} parent=23 // pred_check
          %p146 = pneg %p65
        $region26: #{tpu_custom_call.1} parent=23 // pred_check_branch
          %148 = sbr.rel (%p146) target = $region28
        $region27: #{tpu_custom_call.1} parent=23 // pred_region
          %149 = dma.done %s142, 64
        $region28: #{tpu_custom_call.1} parent=23 // pred_fallthru
          _
        %s150 = sand.u32 %s52, 1
        %s151 = scalar_lea.sflag [#allocation6], %s150
        %s152 = sand.u32 %s52, 1
        %s153 = smul.addr %s152, 4
        %s154 = scalar_lea.vmem [#allocation5], %s153
        %p155 = pneg %p65
        %p156 = pneg %p62
        %p157 = pneg %p93
        %p158 = pneg %p90
        %s159 = sand.u32 %s80, 1
        %s160 = scalar_lea.sflag [#allocation7], %s159
        %s161 = sand.u32 %s80, 1
        %s162 = smul.addr %s161, 4
        %s163 = scalar_lea.vmem [#allocation8], %s162
        %s164 = sld [smem:[#allocation3 + %s32]]
        %s165 = sld [smem:[#allocation4 + %s32]]
        %v166 = vld [vmem:[%s145] sm:$0x3]
        %v167 = vld [vmem:[%s145 + $0x2] sm:$0x3]
        %v168 = vstv %s165
        %v169 = vmul.f32 %v166, %v168
        %v170 = vmul.f32 %v167, %v168
        %171 = vst [vmem:[%s163] sm:$0x3] %v169
        %172 = vst [vmem:[%s163 + $0x2] sm:$0x3] %v170
        %s173 = sand.u32 %s80, 1
        %s174 = scalar_lea.sflag [#allocation7], %s173
        %s175 = sand.u32 %s80, 1
        %s176 = smul.addr %s175, 4
        %s177 = scalar_lea.vmem [#allocation8], %s176
        // Predicated region
        $region29: #{tpu_custom_call.1} parent=23 // pred_check
          %p178 = pneg %p90
        $region30: #{tpu_custom_call.1} parent=23 // pred_check_branch
          %180 = sbr.rel (%p178) target = $region32
        $region31: #{tpu_custom_call.1} parent=23 // pred_region
          %s182 = ssub.s32 64, 64
          %183 = vsyncadd %s174, %s182
          %s184 = sadd.s32 %s33, %s32
          %s185 = smul.addr %s184, 32
          %s186 = scalar_lea.hbm %s3, %s185
          %s187 = sshll.u32 %s177, 4
          %s188 = int_to_ptr.vmem [resolvable:$true] %s187
          %193 = dma.vmem_to_hbm [thread:$0]  %s188, 64, %s186, %s174, 32, 128, 2
        $region32: #{tpu_custom_call.1} parent=23 // pred_fallthru
          _
      $region24: #{tpu_custom_call.1} parent=5 // pred_fallthru
        _
      %p194 = scmp.le.s32.totalorder 2, %s23
      // Predicated region
      $region33: #{tpu_custom_call.1} parent=5 // pred_check
        %p195 = pneg %p194
      $region34: #{tpu_custom_call.1} parent=5 // pred_check_branch
        %197 = sbr.rel (%p195) target = $region36
      $region35: #{tpu_custom_call.1} parent=5 // pred_region
        %s198 = ssub.s32 %s23, 2
        // Predicated region
        $region37: #{tpu_custom_call.1} parent=35 // pred_check
          %p199 = pneg %p96
        $region38: #{tpu_custom_call.1} parent=35 // pred_check_branch
          %201 = sbr.rel (%p199) target = $region40
        $region39: #{tpu_custom_call.1} parent=35 // pred_region
          %s202 = sand.u32 %s81, 1
          %s203 = scalar_lea.sflag [#allocation7], %s202
          %s204 = sand.u32 %s81, 1
          %s205 = smul.addr %s204, 4
          %s206 = scalar_lea.vmem [#allocation8], %s205
          %207 = dma.done %s203, 64
        $region40: #{tpu_custom_call.1} parent=35 // pred_fallthru
          _
      $region36: #{tpu_custom_call.1} parent=5 // pred_fallthru
        _
    $region6: #{tpu_custom_call.1} parent=1 // loop_footer
      %s27 = sadd.s32 1, %s23
    $region7: #{tpu_custom_call.1} parent=1 // loop_footer_branch
      %22 = sbr.rel target = $region3
    $region8: #{tpu_custom_call.1} parent=1 // loop_exit
      _
    %208 = vsyncpa [#allocation6], 1
    %s209 = scalar_lea.sflag [#allocation6], 1
    %210 = vsyncpa %s209, 1
    %211 = vsyncpa [#allocation7], 1
    %s212 = scalar_lea.sflag [#allocation7], 1
    %213 = vsyncpa %s212, 1

</llo_original>
